<compile_context>
chip_gen: v5e
topology: v5e:2x2
jax: 0.10.0
libtpu: 0.0.40
codegen_flags: <defaults>
</compile_context>

<pallas_src>
import jax
import jax.numpy as jnp
from jax.experimental import pallas as pl
from jax.experimental.pallas import tpu as pltpu


# Channel layout (second axis of the pack, size 7):
#   0: pred_i[a]  1: pred_i[b]  2: pred_j[a]  3: pred_j[b]
#   4: gt_i[a]    5: gt_j[b]    6: mask (pair_ind != 0)
_C_PI_A, _C_PI_B, _C_PJ_A, _C_PJ_B, _C_GI_A, _C_GJ_B, _C_MASK = range(7)
_NCHAN = 7
# Accumulator slots.
_A_HSUM, _A_HCNT, _A_VSUM, _A_VCNT = range(4)


def _dist_loss_kernel(pack_ref, out_ref, acc_ref):
    """pack_ref: (2, NCHAN, r_tile, 128); out_ref: (1, 1); acc_ref: (4, r_tile, 128)."""
    t = pl.program_id(0)

    @pl.when(t == 0)
    def _():
        acc_ref[...] = jnp.zeros_like(acc_ref)

    def direction(d):
        pi_a = pack_ref[d, _C_PI_A]            # each load: (r_tile, 128) f32
        pi_b = pack_ref[d, _C_PI_B]
        pj_a = pack_ref[d, _C_PJ_A]
        pj_b = pack_ref[d, _C_PJ_B]
        gi_a = pack_ref[d, _C_GI_A]
        gj_b = pack_ref[d, _C_GJ_B]
        msk = pack_ref[d, _C_MASK]
        # rank_dist: if ground truth orders (i, j) this way the predicted gap is
        # pred_j[b] - pred_i[a]; otherwise the reversed gap pred_i[b] - pred_j[a].
        dist = jnp.where(gi_a < gj_b, pj_b - pi_a, pi_b - pj_a)
        hinge = jnp.maximum((1.0 - dist) * msk, 0.0)
        return hinge, msk

    h_hinge, h_msk = direction(0)
    v_hinge, v_msk = direction(1)
    # Pure VPU elementwise accumulation; no per-step cross-lane reduction.
    acc_ref[_A_HSUM] += h_hinge
    acc_ref[_A_HCNT] += h_msk
    acc_ref[_A_VSUM] += v_hinge
    acc_ref[_A_VCNT] += v_msk

    @pl.when(t == pl.num_programs(0) - 1)
    def _():
        def total(slot):
            # (r_tile, 128) -> (1, 1): sublane reduce then lane reduce (once per kernel).
            x = acc_ref[slot]
            return jnp.sum(jnp.sum(x, axis=0, keepdims=True), axis=1, keepdims=True)

        out_ref[...] = (total(_A_HSUM) / (total(_A_HCNT) + 1e-5)
                        + total(_A_VSUM) / (total(_A_VCNT) + 1e-5))


def _build_pack(logi, logic, h_pair_ind, v_pair_ind, n_pad):
    """Gather the 7 coordinates each direction needs, lane-dense (2, 7, R, 128)."""
    B, K, _ = logi.shape
    pred = logi.reshape(B * K, -1).astype(jnp.float32)
    gt = logic.reshape(B * K, -1).astype(jnp.float32)
    base = (jnp.arange(B, dtype=jnp.int32) * K)[:, None]          # (B, 1)

    def one(pair_ind, a, b):
        ind = pair_ind.astype(jnp.int32)                          # (B, P)
        pad = n_pad - ind.size
        # Pad the tiny int32/mask arrays (index 0 -> mask 0), never the f32 pack.
        i = jnp.pad((ind // K + base).reshape(-1), (0, pad))      # (n_pad,)
        j = jnp.pad((ind % K + base).reshape(-1), (0, pad))
        msk = jnp.pad((ind != 0).astype(jnp.float32).reshape(-1), (0, pad))
        chans = jnp.stack([
            pred[:, a][i], pred[:, b][i],
            pred[:, a][j], pred[:, b][j],
            gt[:, a][i], gt[:, b][j],
            msk,
        ], axis=0)                                                # (7, n_pad)
        return chans.reshape(_NCHAN, n_pad // 128, 128)

    # horizontal uses columns (a, b) = (end_col=3, start_col=2);
    # vertical   uses rows    (a, b) = (end_row=1, start_row=0).
    h = one(h_pair_ind, 3, 2)
    v = one(v_pair_ind, 1, 0)
    return jnp.stack([h, v], axis=0)                              # (2, 7, R, 128)


def dist_loss(h_pair_ind, v_pair_ind, logic, logi, *, pair_tile=32768):
    """Pallas DistLoss. logi/logic: (B, K, 4) logical coords; *_pair_ind: (B, P)."""
    B, K, C = logi.shape
    assert C >= 4

    n = B * max(h_pair_ind.shape[1], v_pair_ind.shape[1])
    # Tile granularity = 8 sublanes x 128 lanes; cap for v7x's smaller VMEM.
    pair_tile = max(1024, min(int(pair_tile), 131072))
    pair_tile = (pair_tile // 1024) * 1024
    tile = min(pair_tile, pl.cdiv(n, 1024) * 1024)
    n_pad = pl.cdiv(n, tile) * tile
    r_tile = tile // 128
    n_tiles = n_pad // tile

    pack = _build_pack(logi, logic, h_pair_ind, v_pair_ind, n_pad)  # (2, 7, R, 128)

    block_bytes = 2 * _NCHAN * r_tile * 128 * 4
    vmem_limit = int(min(96 << 20, 3 * block_bytes + (8 << 20)))

    out = pl.pallas_call(
        _dist_loss_kernel,
        out_shape=jax.ShapeDtypeStruct((1, 1), jnp.float32),
        grid_spec=pltpu.PrefetchScalarGridSpec(
            num_scalar_prefetch=0,
            grid=(n_tiles,),
            in_specs=[
                pl.BlockSpec((2, _NCHAN, r_tile, 128), lambda t: (0, 0, t, 0)),
            ],
            out_specs=pl.BlockSpec((1, 1), lambda t: (0, 0)),
            scratch_shapes=[pltpu.VMEM((4, r_tile, 128), jnp.float32)],
        ),
        compiler_params=pltpu.CompilerParams(
            dimension_semantics=("arbitrary",),
            vmem_limit_bytes=vmem_limit),
    )(pack)
    return out[0, 0]


def dist_loss_ref(h_pair_ind, v_pair_ind, logic, logi):
    """Pure-JAX mirror of the PyTorch DistLoss.forward (builds the full pair feat)."""
    B, K, C = logi.shape

    def make_pair(feat):
        f1 = jnp.broadcast_to(feat[:, :, None, :], (B, K, K, C))
        f2 = jnp.broadcast_to(feat[:, None, :, :], (B, K, K, C))
        return jnp.concatenate([f1, f2], axis=3).reshape(B, K * K, 2 * C)

    def gather(feat, ind):
        return jnp.take_along_axis(feat, ind[..., None].astype(jnp.int32), axis=1)

    pred_pair = make_pair(logi.astype(jnp.float32))
    logic_pair = make_pair(logic.astype(jnp.float32))
    h_pred = gather(pred_pair, h_pair_ind)
    v_pred = gather(pred_pair, v_pair_ind)
    h_pair = gather(logic_pair, h_pair_ind)
    v_pair = gather(logic_pair, v_pair_ind)

    h_dist = jnp.where(h_pair[:, :, 3] < h_pair[:, :, 6],
                       h_pred[:, :, 6] - h_pred[:, :, 3],
                       h_pred[:, :, 2] - h_pred[:, :, 7])
    v_dist = jnp.where(v_pair[:, :, 1] < v_pair[:, :, 4],
                       v_pred[:, :, 4] - v_pred[:, :, 1],
                       v_pred[:, :, 0] - v_pred[:, :, 5])

    h_m = (h_pair_ind != 0).astype(jnp.float32)
    v_m = (v_pair_ind != 0).astype(jnp.float32)
    return (jnp.sum(jnp.maximum(0.0, (1.0 - h_dist) * h_m)) / (jnp.sum(h_m) + 1e-5)
            + jnp.sum(jnp.maximum(0.0, (1.0 - v_dist) * v_m)) / (jnp.sum(v_m) + 1e-5))


if __name__ == "__main__":
    key = jax.random.PRNGKey(0)
    k1, k2, k3, k4 = jax.random.split(key, 4)

    B, K, C = 2, 6, 4        # batch, table cells, logical-coordinate channels
    P = 8                    # pairs per batch (pair index 0 acts as padding)

    # Ground-truth logical coordinates [start_row, end_row, start_col, end_col]
    logic = jax.random.randint(k1, (B, K, C), 0, 5).astype(jnp.float32)
    # Predicted logical coordinates = ground truth + noise
    logi = logic + 0.3 * jax.random.normal(k2, (B, K, C), dtype=jnp.float32)
    # Flattened pair indices into the K*K pair grid
    h_pair_ind = jax.random.randint(k3, (B, P), 0, K * K, dtype=jnp.int32)
    v_pair_ind = jax.random.randint(k4, (B, P), 0, K * K, dtype=jnp.int32)

    loss = dist_loss(h_pair_ind, v_pair_ind, logic, logi)
    jax.block_until_ready(loss)

    ref = dist_loss_ref(h_pair_ind, v_pair_ind, logic, logi)
    assert jnp.allclose(loss, ref, rtol=1e-5, atol=1e-5), (loss, ref)

    print("KERNEL_OK")
</pallas_src>

<mosaic_0001>
module attributes {stable_mosaic.version = 11 : i64} {
  func.func @_dist_loss_kernel(%arg0: i32, %arg1: memref<2x7x8x128xf32, #tpu.memory_space<vmem>>, %arg2: memref<1x1xf32, #tpu.memory_space<vmem>>, %arg3: memref<4x8x128xf32, #tpu.memory_space<vmem>>) attributes {dimension_semantics = [#tpu.dimension_semantics<arbitrary>], iteration_bounds = array<i64: 1>, scalar_prefetch = 0 : i64, scratch_operands = 1 : i64, tpu.core_type = #tpu.core_type<tc>, window_params = [{transform_indices = @transform_0, window_bounds = array<i64: 2, 7, 8, 128>}, {pipeline_mode = #tpu.pipeline_mode<synchronous>, transform_indices = @transform_1, window_bounds = array<i64: 1, 1>}]} {
    %c0_i32 = arith.constant 0 : i32
    %0 = arith.cmpi eq, %arg0, %c0_i32 : i32
    %1 = arith.extui %0 : i1 to i32
    %c0_i32_0 = arith.constant 0 : i32
    %2 = arith.cmpi ne, %1, %c0_i32_0 : i32
    scf.if %2 {
      %cst_79 = arith.constant 0.000000e+00 : f32
      %76 = vector.broadcast %cst_79 : f32 to vector<4x8x128xf32>
      %c0_80 = arith.constant 0 : index
      %c0_81 = arith.constant 0 : index
      %c0_82 = arith.constant 0 : index
      %77 = vector.load %arg3[%c0_80, %c0_81, %c0_82] : memref<4x8x128xf32, #tpu.memory_space<vmem>>, vector<4x8x128xf32>
      tpu.vector_store %arg3[%c0_80, %c0_81, %c0_82], %76 {strides = array<i32>} : memref<4x8x128xf32, #tpu.memory_space<vmem>>, vector<4x8x128xf32>,
    } else {
    }
    %c0 = arith.constant 0 : index
    %c0_1 = arith.constant 0 : index
    %c0_2 = arith.constant 0 : index
    %c0_3 = arith.constant 0 : index
    %3 = vector.load %arg1[%c0, %c0_1, %c0_2, %c0_3] : memref<2x7x8x128xf32, #tpu.memory_space<vmem>>, vector<1x1x8x128xf32>
    %4 = vector.shape_cast %3 : vector<1x1x8x128xf32> to vector<8x128xf32>
    %c0_4 = arith.constant 0 : index
    %c1 = arith.constant 1 : index
    %c0_5 = arith.constant 0 : index
    %c0_6 = arith.constant 0 : index
    %5 = vector.load %arg1[%c0_4, %c1, %c0_5, %c0_6] : memref<2x7x8x128xf32, #tpu.memory_space<vmem>>, vector<1x1x8x128xf32>
    %6 = vector.shape_cast %5 : vector<1x1x8x128xf32> to vector<8x128xf32>
    %c0_7 = arith.constant 0 : index
    %c2 = arith.constant 2 : index
    %c0_8 = arith.constant 0 : index
    %c0_9 = arith.constant 0 : index
    %7 = vector.load %arg1[%c0_7, %c2, %c0_8, %c0_9] : memref<2x7x8x128xf32, #tpu.memory_space<vmem>>, vector<1x1x8x128xf32>
    %8 = vector.shape_cast %7 : vector<1x1x8x128xf32> to vector<8x128xf32>
    %c0_10 = arith.constant 0 : index
    %c3 = arith.constant 3 : index
    %c0_11 = arith.constant 0 : index
    %c0_12 = arith.constant 0 : index
    %9 = vector.load %arg1[%c0_10, %c3, %c0_11, %c0_12] : memref<2x7x8x128xf32, #tpu.memory_space<vmem>>, vector<1x1x8x128xf32>
    %10 = vector.shape_cast %9 : vector<1x1x8x128xf32> to vector<8x128xf32>
    %c0_13 = arith.constant 0 : index
    %c4 = arith.constant 4 : index
    %c0_14 = arith.constant 0 : index
    %c0_15 = arith.constant 0 : index
    %11 = vector.load %arg1[%c0_13, %c4, %c0_14, %c0_15] : memref<2x7x8x128xf32, #tpu.memory_space<vmem>>, vector<1x1x8x128xf32>
    %12 = vector.shape_cast %11 : vector<1x1x8x128xf32> to vector<8x128xf32>
    %c0_16 = arith.constant 0 : index
    %c5 = arith.constant 5 : index
    %c0_17 = arith.constant 0 : index
    %c0_18 = arith.constant 0 : index
    %13 = vector.load %arg1[%c0_16, %c5, %c0_17, %c0_18] : memref<2x7x8x128xf32, #tpu.memory_space<vmem>>, vector<1x1x8x128xf32>
    %14 = vector.shape_cast %13 : vector<1x1x8x128xf32> to vector<8x128xf32>
    %c0_19 = arith.constant 0 : index
    %c6 = arith.constant 6 : index
    %c0_20 = arith.constant 0 : index
    %c0_21 = arith.constant 0 : index
    %15 = vector.load %arg1[%c0_19, %c6, %c0_20, %c0_21] : memref<2x7x8x128xf32, #tpu.memory_space<vmem>>, vector<1x1x8x128xf32>
    %16 = vector.shape_cast %15 : vector<1x1x8x128xf32> to vector<8x128xf32>
    %17 = arith.cmpf olt, %12, %14 : vector<8x128xf32>
    %18 = arith.subf %10, %4 : vector<8x128xf32>
    %19 = arith.subf %6, %8 : vector<8x128xf32>
    %20 = arith.select %17, %18, %19 : vector<8x128xi1>, vector<8x128xf32>
    %cst = arith.constant 1.000000e+00 : f32
    %21 = vector.broadcast %cst : f32 to vector<8x128xf32>
    %22 = arith.subf %21, %20 : vector<8x128xf32>
    %23 = arith.mulf %22, %16 : vector<8x128xf32>
    %cst_22 = arith.constant 0.000000e+00 : f32
    %24 = vector.broadcast %cst_22 : f32 to vector<8x128xf32>
    %25 = arith.maximumf %23, %24 : vector<8x128xf32>
    %c1_23 = arith.constant 1 : index
    %c0_24 = arith.constant 0 : index
    %c0_25 = arith.constant 0 : index
    %c0_26 = arith.constant 0 : index
    %26 = vector.load %arg1[%c1_23, %c0_24, %c0_25, %c0_26] : memref<2x7x8x128xf32, #tpu.memory_space<vmem>>, vector<1x1x8x128xf32>
    %27 = vector.shape_cast %26 : vector<1x1x8x128xf32> to vector<8x128xf32>
    %c1_27 = arith.constant 1 : index
    %c1_28 = arith.constant 1 : index
    %c0_29 = arith.constant 0 : index
    %c0_30 = arith.constant 0 : index
    %28 = vector.load %arg1[%c1_27, %c1_28, %c0_29, %c0_30] : memref<2x7x8x128xf32, #tpu.memory_space<vmem>>, vector<1x1x8x128xf32>
    %29 = vector.shape_cast %28 : vector<1x1x8x128xf32> to vector<8x128xf32>
    %c1_31 = arith.constant 1 : index
    %c2_32 = arith.constant 2 : index
    %c0_33 = arith.constant 0 : index
    %c0_34 = arith.constant 0 : index
    %30 = vector.load %arg1[%c1_31, %c2_32, %c0_33, %c0_34] : memref<2x7x8x128xf32, #tpu.memory_space<vmem>>, vector<1x1x8x128xf32>
    %31 = vector.shape_cast %30 : vector<1x1x8x128xf32> to vector<8x128xf32>
    %c1_35 = arith.constant 1 : index
    %c3_36 = arith.constant 3 : index
    %c0_37 = arith.constant 0 : index
    %c0_38 = arith.constant 0 : index
    %32 = vector.load %arg1[%c1_35, %c3_36, %c0_37, %c0_38] : memref<2x7x8x128xf32, #tpu.memory_space<vmem>>, vector<1x1x8x128xf32>
    %33 = vector.shape_cast %32 : vector<1x1x8x128xf32> to vector<8x128xf32>
    %c1_39 = arith.constant 1 : index
    %c4_40 = arith.constant 4 : index
    %c0_41 = arith.constant 0 : index
    %c0_42 = arith.constant 0 : index
    %34 = vector.load %arg1[%c1_39, %c4_40, %c0_41, %c0_42] : memref<2x7x8x128xf32, #tpu.memory_space<vmem>>, vector<1x1x8x128xf32>
    %35 = vector.shape_cast %34 : vector<1x1x8x128xf32> to vector<8x128xf32>
    %c1_43 = arith.constant 1 : index
    %c5_44 = arith.constant 5 : index
    %c0_45 = arith.constant 0 : index
    %c0_46 = arith.constant 0 : index
    %36 = vector.load %arg1[%c1_43, %c5_44, %c0_45, %c0_46] : memref<2x7x8x128xf32, #tpu.memory_space<vmem>>, vector<1x1x8x128xf32>
    %37 = vector.shape_cast %36 : vector<1x1x8x128xf32> to vector<8x128xf32>
    %c1_47 = arith.constant 1 : index
    %c6_48 = arith.constant 6 : index
    %c0_49 = arith.constant 0 : index
    %c0_50 = arith.constant 0 : index
    %38 = vector.load %arg1[%c1_47, %c6_48, %c0_49, %c0_50] : memref<2x7x8x128xf32, #tpu.memory_space<vmem>>, vector<1x1x8x128xf32>
    %39 = vector.shape_cast %38 : vector<1x1x8x128xf32> to vector<8x128xf32>
    %40 = arith.cmpf olt, %35, %37 : vector<8x128xf32>
    %41 = arith.subf %33, %27 : vector<8x128xf32>
    %42 = arith.subf %29, %31 : vector<8x128xf32>
    %43 = arith.select %40, %41, %42 : vector<8x128xi1>, vector<8x128xf32>
    %cst_51 = arith.constant 1.000000e+00 : f32
    %44 = vector.broadcast %cst_51 : f32 to vector<8x128xf32>
    %45 = arith.subf %44, %43 : vector<8x128xf32>
    %46 = arith.mulf %45, %39 : vector<8x128xf32>
    %cst_52 = arith.constant 0.000000e+00 : f32
    %47 = vector.broadcast %cst_52 : f32 to vector<8x128xf32>
    %48 = arith.maximumf %46, %47 : vector<8x128xf32>
    %c0_53 = arith.constant 0 : index
    %c0_54 = arith.constant 0 : index
    %c0_55 = arith.constant 0 : index
    %49 = vector.load %arg3[%c0_53, %c0_54, %c0_55] : memref<4x8x128xf32, #tpu.memory_space<vmem>>, vector<1x8x128xf32>
    %50 = vector.shape_cast %49 : vector<1x8x128xf32> to vector<8x128xf32>
    %51 = arith.addf %50, %25 : vector<8x128xf32>
    %c0_56 = arith.constant 0 : index
    %c0_57 = arith.constant 0 : index
    %c0_58 = arith.constant 0 : index
    %52 = vector.load %arg3[%c0_56, %c0_57, %c0_58] : memref<4x8x128xf32, #tpu.memory_space<vmem>>, vector<1x8x128xf32>
    %53 = vector.shape_cast %52 : vector<1x8x128xf32> to vector<8x128xf32>
    %54 = vector.shape_cast %51 : vector<8x128xf32> to vector<1x8x128xf32>
    tpu.vector_store %arg3[%c0_56, %c0_57, %c0_58], %54 {strides = array<i32>} : memref<4x8x128xf32, #tpu.memory_space<vmem>>, vector<1x8x128xf32>,
    %c1_59 = arith.constant 1 : index
    %c0_60 = arith.constant 0 : index
    %c0_61 = arith.constant 0 : index
    %55 = vector.load %arg3[%c1_59, %c0_60, %c0_61] : memref<4x8x128xf32, #tpu.memory_space<vmem>>, vector<1x8x128xf32>
    %56 = vector.shape_cast %55 : vector<1x8x128xf32> to vector<8x128xf32>
    %57 = arith.addf %56, %16 : vector<8x128xf32>
    %c1_62 = arith.constant 1 : index
    %c0_63 = arith.constant 0 : index
    %c0_64 = arith.constant 0 : index
    %58 = vector.load %arg3[%c1_62, %c0_63, %c0_64] : memref<4x8x128xf32, #tpu.memory_space<vmem>>, vector<1x8x128xf32>
    %59 = vector.shape_cast %58 : vector<1x8x128xf32> to vector<8x128xf32>
    %60 = vector.shape_cast %57 : vector<8x128xf32> to vector<1x8x128xf32>
    tpu.vector_store %arg3[%c1_62, %c0_63, %c0_64], %60 {strides = array<i32>} : memref<4x8x128xf32, #tpu.memory_space<vmem>>, vector<1x8x128xf32>,
    %c2_65 = arith.constant 2 : index
    %c0_66 = arith.constant 0 : index
    %c0_67 = arith.constant 0 : index
    %61 = vector.load %arg3[%c2_65, %c0_66, %c0_67] : memref<4x8x128xf32, #tpu.memory_space<vmem>>, vector<1x8x128xf32>
    %62 = vector.shape_cast %61 : vector<1x8x128xf32> to vector<8x128xf32>
    %63 = arith.addf %62, %48 : vector<8x128xf32>
    %c2_68 = arith.constant 2 : index
    %c0_69 = arith.constant 0 : index
    %c0_70 = arith.constant 0 : index
    %64 = vector.load %arg3[%c2_68, %c0_69, %c0_70] : memref<4x8x128xf32, #tpu.memory_space<vmem>>, vector<1x8x128xf32>
    %65 = vector.shape_cast %64 : vector<1x8x128xf32> to vector<8x128xf32>
    %66 = vector.shape_cast %63 : vector<8x128xf32> to vector<1x8x128xf32>
    tpu.vector_store %arg3[%c2_68, %c0_69, %c0_70], %66 {strides = array<i32>} : memref<4x8x128xf32, #tpu.memory_space<vmem>>, vector<1x8x128xf32>,
    %c3_71 = arith.constant 3 : index
    %c0_72 = arith.constant 0 : index
    %c0_73 = arith.constant 0 : index
    %67 = vector.load %arg3[%c3_71, %c0_72, %c0_73] : memref<4x8x128xf32, #tpu.memory_space<vmem>>, vector<1x8x128xf32>
    %68 = vector.shape_cast %67 : vector<1x8x128xf32> to vector<8x128xf32>
    %69 = arith.addf %68, %39 : vector<8x128xf32>
    %c3_74 = arith.constant 3 : index
    %c0_75 = arith.constant 0 : index
    %c0_76 = arith.constant 0 : index
    %70 = vector.load %arg3[%c3_74, %c0_75, %c0_76] : memref<4x8x128xf32, #tpu.memory_space<vmem>>, vector<1x8x128xf32>
    %71 = vector.shape_cast %70 : vector<1x8x128xf32> to vector<8x128xf32>
    %72 = vector.shape_cast %69 : vector<8x128xf32> to vector<1x8x128xf32>
    tpu.vector_store %arg3[%c3_74, %c0_75, %c0_76], %72 {strides = array<i32>} : memref<4x8x128xf32, #tpu.memory_space<vmem>>, vector<1x8x128xf32>,
    %c0_i32_77 = arith.constant 0 : i32
    %73 = arith.cmpi eq, %arg0, %c0_i32_77 : i32
    %74 = arith.extui %73 : i1 to i32
    %c0_i32_78 = arith.constant 0 : i32
    %75 = arith.cmpi ne, %74, %c0_i32_78 : i32
    scf.if %75 {
      %c0_79 = arith.constant 0 : index
      %c0_80 = arith.constant 0 : index
      %c0_81 = arith.constant 0 : index
      %76 = vector.load %arg3[%c0_79, %c0_80, %c0_81] : memref<4x8x128xf32, #tpu.memory_space<vmem>>, vector<1x8x128xf32>
      %77 = vector.shape_cast %76 : vector<1x8x128xf32> to vector<8x128xf32>
      %cst_82 = arith.constant dense<0.000000e+00> : vector<128xf32>
      %78 = vector.multi_reduction <add>, %77, %cst_82 [0] : vector<8x128xf32> to vector<128xf32>
      %79 = vector.shape_cast %78 : vector<128xf32> to vector<1x128xf32>
      %cst_83 = arith.constant dense<0.000000e+00> : vector<1xf32>
      %80 = vector.multi_reduction <add>, %79, %cst_83 [1] : vector<1x128xf32> to vector<1xf32>
      %81 = vector.shape_cast %80 : vector<1xf32> to vector<1x1xf32>
      %c1_84 = arith.constant 1 : index
      %c0_85 = arith.constant 0 : index
      %c0_86 = arith.constant 0 : index
      %82 = vector.load %arg3[%c1_84, %c0_85, %c0_86] : memref<4x8x128xf32, #tpu.memory_space<vmem>>, vector<1x8x128xf32>
      %83 = vector.shape_cast %82 : vector<1x8x128xf32> to vector<8x128xf32>
      %cst_87 = arith.constant dense<0.000000e+00> : vector<128xf32>
      %84 = vector.multi_reduction <add>, %83, %cst_87 [0] : vector<8x128xf32> to vector<128xf32>
      %85 = vector.shape_cast %84 : vector<128xf32> to vector<1x128xf32>
      %cst_88 = arith.constant dense<0.000000e+00> : vector<1xf32>
      %86 = vector.multi_reduction <add>, %85, %cst_88 [1] : vector<1x128xf32> to vector<1xf32>
      %87 = vector.shape_cast %86 : vector<1xf32> to vector<1x1xf32>
      %cst_89 = arith.constant 9.99999974E-6 : f32
      %88 = vector.broadcast %cst_89 : f32 to vector<1x1xf32>
      %89 = arith.addf %87, %88 : vector<1x1xf32>
      %90 = arith.divf %81, %89 : vector<1x1xf32>
      %c2_90 = arith.constant 2 : index
      %c0_91 = arith.constant 0 : index
      %c0_92 = arith.constant 0 : index
      %91 = vector.load %arg3[%c2_90, %c0_91, %c0_92] : memref<4x8x128xf32, #tpu.memory_space<vmem>>, vector<1x8x128xf32>
      %92 = vector.shape_cast %91 : vector<1x8x128xf32> to vector<8x128xf32>
      %cst_93 = arith.constant dense<0.000000e+00> : vector<128xf32>
      %93 = vector.multi_reduction <add>, %92, %cst_93 [0] : vector<8x128xf32> to vector<128xf32>
      %94 = vector.shape_cast %93 : vector<128xf32> to vector<1x128xf32>
      %cst_94 = arith.constant dense<0.000000e+00> : vector<1xf32>
      %95 = vector.multi_reduction <add>, %94, %cst_94 [1] : vector<1x128xf32> to vector<1xf32>
      %96 = vector.shape_cast %95 : vector<1xf32> to vector<1x1xf32>
      %c3_95 = arith.constant 3 : index
      %c0_96 = arith.constant 0 : index
      %c0_97 = arith.constant 0 : index
      %97 = vector.load %arg3[%c3_95, %c0_96, %c0_97] : memref<4x8x128xf32, #tpu.memory_space<vmem>>, vector<1x8x128xf32>
      %98 = vector.shape_cast %97 : vector<1x8x128xf32> to vector<8x128xf32>
      %cst_98 = arith.constant dense<0.000000e+00> : vector<128xf32>
      %99 = vector.multi_reduction <add>, %98, %cst_98 [0] : vector<8x128xf32> to vector<128xf32>
      %100 = vector.shape_cast %99 : vector<128xf32> to vector<1x128xf32>
      %cst_99 = arith.constant dense<0.000000e+00> : vector<1xf32>
      %101 = vector.multi_reduction <add>, %100, %cst_99 [1] : vector<1x128xf32> to vector<1xf32>
      %102 = vector.shape_cast %101 : vector<1xf32> to vector<1x1xf32>
      %cst_100 = arith.constant 9.99999974E-6 : f32
      %103 = vector.broadcast %cst_100 : f32 to vector<1x1xf32>
      %104 = arith.addf %102, %103 : vector<1x1xf32>
      %105 = arith.divf %96, %104 : vector<1x1xf32>
      %106 = arith.addf %90, %105 : vector<1x1xf32>
      %c0_101 = arith.constant 0 : index
      %c0_102 = arith.constant 0 : index
      %107 = vector.load %arg2[%c0_101, %c0_102] : memref<1x1xf32, #tpu.memory_space<vmem>>, vector<1x1xf32>
      tpu.vector_store %arg2[%c0_101, %c0_102], %106 {strides = array<i32>} : memref<1x1xf32, #tpu.memory_space<vmem>>, vector<1x1xf32>,
    } else {
    }
    return
  }
  func.func @transform_0(%arg0: i32) -> (i32, i32, i32, i32) {
    %c0_i32 = arith.constant 0 : i32
    %c0_i32_0 = arith.constant 0 : i32
    %c0_i32_1 = arith.constant 0 : i32
    %c0_i32_2 = arith.constant 0 : i32
    return %c0_i32, %c0_i32_0, %arg0, %c0_i32_1 : i32, i32, i32, i32
  }
  func.func @transform_1(%arg0: i32) -> (i32, i32) {
    %c0_i32 = arith.constant 0 : i32
    %c0_i32_0 = arith.constant 0 : i32
    %c0_i32_1 = arith.constant 0 : i32
    return %c0_i32, %c0_i32_0 : i32, i32
  }
}

</mosaic_0001>

<llo_original>
// kernel: tpu_custom_call.1
$region0: #{tpu_custom_call.1}
  #allocation0 [shape = 'u32[]', space=smem, size = 0x4, offset = 0x4, fixed_abs, tag = 'smem constant byte address 0x4 - core index']
  #allocation1 [shape = 'u32[72,128]{1,0:T(1,128)}', space=vmem, size = 0x9000, scoped, tag = 'internal scratch']
  #allocation2 [shape = 'f32[4,8,128]{2,1,0:T(8,128)}', space=vmem, size = 0x4000, scoped, tag = 'scratch operand']
  %s0 = inlined_call_operand.hbm [shape: f32[2,7,8,128], index: 0, kind: input, shape index: {}]
  %s1 = inlined_call_operand.hbm [shape: f32[1,1], index: 1, kind: output, shape index: {}]
  %s2 = sld [smem:[#allocation0]]
  $region26: #{tpu_custom_call.1} parent=0
    _
  %s4 = ssub.s32 1, %s2
  %s5 = scalar_select 0, %s4, %s2
  $region1: #{tpu_custom_call.1} parent=0
    #allocation3 [shape = 'u8[57344]{0}', space=vmem, size = 0xe000, scoped, tag = 'input window, operand 0, single buffered']
    #allocation4 [shape = 's32[1]{0}', space=sflag, size = 0x4, scoped, tag = 'scoped memory for tpu_custom_call.1']
    #allocation5 [shape = 's32[1]{0}', space=sflag, size = 0x4, scoped, tag = 'scoped memory for tpu_custom_call.1']
    #allocation6 [shape = 'u8[512]{0}', space=vmem, size = 0x400, scoped, tag = 'output window, operand 0, single buffered']
    %6 = vsyncpa [#allocation4], 0
    %7 = vsyncpa [#allocation5], 0
    // Predicated region
    $region2: #{tpu_custom_call.1} parent=1 // pred_check
      _
    $region3: #{tpu_custom_call.1} parent=1 // pred_check_branch
      %9 = sbr.rel (0) target = $region5
    $region4: #{tpu_custom_call.1} parent=1 // pred_region
      %11 = vsyncadd [#allocation4], 0
      %s12 = sshll.u32 %s0, 4
      %s13 = int_to_ptr.hbm [resolvable:$true] %s12
      %s14 = sshll.u32 [#allocation3], 4
      %s15 = int_to_ptr.vmem [resolvable:$true] %s14
      %20 = dma.hbm_to_vmem [thread:$0]  %s13, 1792, %s15, [#allocation4], 128, 128, 8
    $region5: #{tpu_custom_call.1} parent=1 // pred_fallthru
      _
    // Predicated region
    $region6: #{tpu_custom_call.1} parent=1 // pred_check
      _
    $region7: #{tpu_custom_call.1} parent=1 // pred_check_branch
      %22 = sbr.rel (0) target = $region9
    $region8: #{tpu_custom_call.1} parent=1 // pred_region
      %24 = dma.done [#allocation4], 1792
    $region9: #{tpu_custom_call.1} parent=1 // pred_fallthru
      _
    %p25 = scmp.eq.s32.totalorder 0, 0
    // Predicated region
    $region10: #{tpu_custom_call.1} parent=1 // pred_check
      %p26 = pneg %p25
    $region11: #{tpu_custom_call.1} parent=1 // pred_check_branch
      %28 = sbr.rel (%p26) target = $region13
    $region12: #{tpu_custom_call.1} parent=1 // pred_region
      %29 = vst [vmem:[#allocation2] sm:$0xff] 0.0
      %30 = vst [vmem:[#allocation2 + $0x8] sm:$0xff] 0.0
      %31 = vst [vmem:[#allocation2 + $0x10] sm:$0xff] 0.0
      %32 = vst [vmem:[#allocation2 + $0x18] sm:$0xff] 0.0
    $region13: #{tpu_custom_call.1} parent=1 // pred_fallthru
      _
    %v33 = vld [vmem:[#allocation3] sm:$0xff]
    %s34 = scalar_lea.vmem [#allocation3], 8
    %v35 = vld [vmem:[%s34] sm:$0xff]
    %s36 = scalar_lea.vmem [#allocation3], 16
    %v37 = vld [vmem:[%s36] sm:$0xff]
    %s38 = scalar_lea.vmem [#allocation3], 24
    %v39 = vld [vmem:[%s38] sm:$0xff]
    %s40 = scalar_lea.vmem [#allocation3], 32
    %v41 = vld [vmem:[%s40] sm:$0xff]
    %s42 = scalar_lea.vmem [#allocation3], 40
    %v43 = vld [vmem:[%s42] sm:$0xff]
    %s44 = scalar_lea.vmem [#allocation3], 48
    %v45 = vld [vmem:[%s44] sm:$0xff]
    %vm46 = vcmp.lt.f32.partialorder %v41, %v43
    %v47 = vsub.f32 %v39, %v33
    %v48 = vsub.f32 %v35, %v37
    %v49 = vsel %vm46, %v47, %v48
    %v50 = vsub.f32 1.0, %v49
    %v51 = vmul.f32 %v50, %v45
    %v52 = vmax.f32 %v51, 0.0
    %s53 = scalar_lea.vmem [#allocation3], 56
    %v54 = vld [vmem:[%s53] sm:$0xff]
    %s55 = scalar_lea.vmem [#allocation3], 64
    %v56 = vld [vmem:[%s55] sm:$0xff]
    %s57 = scalar_lea.vmem [#allocation3], 72
    %v58 = vld [vmem:[%s57] sm:$0xff]
    %s59 = scalar_lea.vmem [#allocation3], 80
    %v60 = vld [vmem:[%s59] sm:$0xff]
    %s61 = scalar_lea.vmem [#allocation3], 88
    %v62 = vld [vmem:[%s61] sm:$0xff]
    %s63 = scalar_lea.vmem [#allocation3], 96
    %v64 = vld [vmem:[%s63] sm:$0xff]
    %s65 = scalar_lea.vmem [#allocation3], 104
    %v66 = vld [vmem:[%s65] sm:$0xff]
    %vm67 = vcmp.lt.f32.partialorder %v62, %v64
    %v68 = vsub.f32 %v60, %v54
    %v69 = vsub.f32 %v56, %v58
    %v70 = vsel %vm67, %v68, %v69
    %v71 = vsub.f32 1.0, %v70
    %v72 = vmul.f32 %v71, %v66
    %v73 = vmax.f32 %v72, 0.0
    %v74 = vld [vmem:[#allocation2] sm:$0xff]
    %v75 = vadd.f32 %v74, %v52
    %76 = vst [vmem:[#allocation2] sm:$0xff] %v75
    %s77 = scalar_lea.vmem [#allocation2], 8
    %v78 = vld [vmem:[%s77] sm:$0xff]
    %v79 = vadd.f32 %v78, %v45
    %80 = vst [vmem:[%s77] sm:$0xff] %v79
    %s81 = scalar_lea.vmem [#allocation2], 16
    %v82 = vld [vmem:[%s81] sm:$0xff]
    %v83 = vadd.f32 %v82, %v73
    %84 = vst [vmem:[%s81] sm:$0xff] %v83
    %s85 = scalar_lea.vmem [#allocation2], 24
    %v86 = vld [vmem:[%s85] sm:$0xff]
    %v87 = vadd.f32 %v86, %v66
    %88 = vst [vmem:[%s85] sm:$0xff] %v87
    // Predicated region
    $region14: #{tpu_custom_call.1} parent=1 // pred_check
      %p89 = pneg %p25
    $region15: #{tpu_custom_call.1} parent=1 // pred_check_branch
      %91 = sbr.rel (%p89) target = $region17
    $region16: #{tpu_custom_call.1} parent=1 // pred_region
      %v92 = vld [vmem:[#allocation2] sm:$0xff]
      %v93 = vrot.slane %v92, 4
      %v94 = vadd.f32 %v92, %v93
      %v95 = vrot.slane %v94, 2
      %v96 = vadd.f32 %v94, %v95
      %v97 = vrot.slane %v96, 1
      %v98 = vadd.f32 %v96, %v97
      %99 = vadd.xlane.f32.xlu0 %v98
      %v100 = vpop.xlane.xlu0 %99
      %v101 = vld [vmem:[%s77] sm:$0xff]
      %v102 = vrot.slane %v101, 4
      %v103 = vadd.f32 %v101, %v102
      %v104 = vrot.slane %v103, 2
      %v105 = vadd.f32 %v103, %v104
      %v106 = vrot.slane %v105, 1
      %v107 = vadd.f32 %v105, %v106
      %108 = vadd.xlane.f32.xlu0 %v107
      %v109 = vpop.xlane.xlu0 %108
      %v110 = vadd.f32 %v109, 1e-05
      %v111 = vrcp.pop %v110
      %v112 = vmul.f32 %v110, %v111
      %v113 = vsub.f32 1.0, %v112
      %v114 = vmul.f32 %v111, %v113
      %v115 = vadd.f32 %v111, %v114
      %vm116 = vweird.f32 %v110
      %vm117 = vweird.f32 %v111
      %vm118 = vmor %vm116, %vm117
      %v119 = vsel %vm118, %v111, %v115
      %v120 = vand.u32 2147483647, %v110
      %vm121 = vcmp.eq.f32.partialorder %v120, 8.507059e+37
      %v122 = vand.u32 %v110, 2147483648
      %v123 = vor.u32 1.1754944e-38, %v122
      %v124 = vsel %vm121, %v123, %v119
      %v125 = vmul.f32 %v100, %v124
      %v126 = vld [vmem:[%s81] sm:$0xff]
      %v127 = vrot.slane %v126, 4
      %v128 = vadd.f32 %v126, %v127
      %v129 = vrot.slane %v128, 2
      %v130 = vadd.f32 %v128, %v129
      %v131 = vrot.slane %v130, 1
      %v132 = vadd.f32 %v130, %v131
      %133 = vadd.xlane.f32.xlu0 %v132
      %v134 = vpop.xlane.xlu0 %133
      %v135 = vld [vmem:[%s85] sm:$0xff]
      %v136 = vrot.slane %v135, 4
      %v137 = vadd.f32 %v135, %v136
      %v138 = vrot.slane %v137, 2
      %v139 = vadd.f32 %v137, %v138
      %v140 = vrot.slane %v139, 1
      %v141 = vadd.f32 %v139, %v140
      %142 = vadd.xlane.f32.xlu0 %v141
      %v143 = vpop.xlane.xlu0 %142
      %v144 = vadd.f32 %v143, 1e-05
      %v145 = vrcp.pop %v144
      %v146 = vmul.f32 %v144, %v145
      %v147 = vsub.f32 1.0, %v146
      %v148 = vmul.f32 %v145, %v147
      %v149 = vadd.f32 %v145, %v148
      %vm150 = vweird.f32 %v144
      %vm151 = vweird.f32 %v145
      %vm152 = vmor %vm150, %vm151
      %v153 = vsel %vm152, %v145, %v149
      %v154 = vand.u32 2147483647, %v144
      %vm155 = vcmp.eq.f32.partialorder %v154, 8.507059e+37
      %v156 = vand.u32 %v144, 2147483648
      %v157 = vor.u32 1.1754944e-38, %v156
      %v158 = vsel %vm155, %v157, %v153
      %v159 = vmul.f32 %v134, %v158
      %v160 = vadd.f32 %v125, %v159
      %vm161 = vcmask 0
      %162 = vst.msk [vmem:[#allocation6] sm:$0x1] %vm161, %v160
    $region17: #{tpu_custom_call.1} parent=1 // pred_fallthru
      _
    // Predicated region
    $region18: #{tpu_custom_call.1} parent=1 // pred_check
      _
    $region19: #{tpu_custom_call.1} parent=1 // pred_check_branch
      %164 = sbr.rel (0) target = $region21
    $region20: #{tpu_custom_call.1} parent=1 // pred_region
      %166 = vsyncadd [#allocation5], 0
      %s168 = sshll.u32 [#allocation6], 4
      %s169 = int_to_ptr.vmem [resolvable:$true] %s168
      %s170 = sshll.u32 %s1, 4
      %s171 = int_to_ptr.hbm [resolvable:$true] %s170
      %173 = dma.vmem_to_hbm [thread:$0]  %s169, 16, %s171, [#allocation5]
    $region21: #{tpu_custom_call.1} parent=1 // pred_fallthru
      _
    // Predicated region
    $region22: #{tpu_custom_call.1} parent=1 // pred_check
      _
    $region23: #{tpu_custom_call.1} parent=1 // pred_check_branch
      %175 = sbr.rel (0) target = $region25
    $region24: #{tpu_custom_call.1} parent=1 // pred_region
      %177 = dma.done [#allocation5], 16
    $region25: #{tpu_custom_call.1} parent=1 // pred_fallthru
      _
    %178 = vsyncpa [#allocation4], 1
    %179 = vsyncpa [#allocation5], 1

</llo_original>
